<compile_context>
chip_gen: v5e
topology: v5e:2x2
jax: 0.10.0
libtpu: 0.0.40
codegen_flags: <defaults>
</compile_context>

<pallas_src>
import jax
import jax.numpy as jnp
from jax.experimental import pallas as pl
from jax.experimental.pallas import tpu as pltpu

HIDDEN_SIZE = 32
INPUT_SIZE = 1
OUTPUT_SIZE = 1
SLAB_ROWS = 40  # H + 4 param rows, padded to a multiple of 8 sublanes


def sinrnn_kernel(x_ref, p_ref, out_ref):
    # x_ref:   (T, B)           input sequence, time-major (I == 1 squeezed)
    # p_ref:   (SLAB_ROWS, H)   packed parameters:
    #            rows 0..H-1 : W_hh^T
    #            row  H      : W_ih row (input_size == 1)
    #            row  H+1    : b_ih + b_hh
    #            row  H+2    : W_fc row (output_size == 1)
    #            row  H+3    : b_fc broadcast across lanes
    # out_ref: (B, O)
    T, B = x_ref.shape
    H = p_ref.shape[1]

    whh = p_ref[0:H, :]            # (H, H)  = W_hh^T
    wih = p_ref[H:H + 1, :]        # (1, H)
    b = p_ref[H + 1:H + 2, :]      # (1, H)  = b_ih + b_hh
    wfc = p_ref[H + 2:H + 3, :]    # (1, H)  = W_fc row
    bfc = p_ref[H + 3:H + 4, :]    # (1, H)  all lanes == b_fc

    x_all = x_ref[...]             # (T, B)

    # Hoisted input projection: one vectorized VPU op covers every timestep,
    # so nothing but MXU + add + tanh sits on the serial h-dependency chain.
    pre_all = x_all[:, :, None] * wih[None] + b[None]   # (T, B, H)

    # Recurrence; h stays in vregs as a loop carry.  h0 == 0 so step 0 needs
    # no matmul.  T is small and static -> full unroll at trace time.
    h = jnp.tanh(pre_all[0])                            # (B, H)
    for t in range(1, T):
        h = jnp.tanh(pre_all[t]
                     + jnp.dot(h, whh, preferred_element_type=jnp.float32))

    # O == 1 head: VPU multiply + XLU lane reduce instead of a tail MXU pass.
    out_ref[...] = (jnp.sum(h * wfc, axis=-1, keepdims=True)
                    + bfc[:, 0:1])


def sinrnn_forward(x, w_ih, w_hh, b_ih, b_hh, w_fc, b_fc):
    """x: (B, T, I) float32 with I == 1. Returns (B, O) float32."""
    B, T, I = x.shape
    assert I == INPUT_SIZE == 1, "kernel specialises the input_size=1 projection"
    H = w_ih.shape[0]
    O = w_fc.shape[0]
    assert O == OUTPUT_SIZE == 1, "kernel specialises the output_size=1 head"

    # Layout prep (cheap, one-time, outside the kernel).
    x_tb = x[:, :, 0].T.astype(jnp.float32)             # (T, B) time-major

    # Pack every parameter into a single slab -> one DMA descriptor.
    slab = jnp.concatenate(
        [
            w_hh.T,                                      # (H, H)  W_hh^T
            w_ih.T,                                      # (1, H)  I == 1
            (b_ih + b_hh)[None, :],                      # (1, H)  pre-summed
            w_fc,                                        # (1, H)  O == 1
            jnp.broadcast_to(b_fc[0], (1, H)),           # (1, H)
            jnp.zeros((SLAB_ROWS - (H + 4), H), jnp.float32),  # pad to 40 rows
        ],
        axis=0,
    ).astype(jnp.float32)

    return pl.pallas_call(
        sinrnn_kernel,
        out_shape=jax.ShapeDtypeStruct((B, O), jnp.float32),
        in_specs=[
            pl.BlockSpec(memory_space=pltpu.MemorySpace.VMEM),
            pl.BlockSpec(memory_space=pltpu.MemorySpace.VMEM),
        ],
        out_specs=pl.BlockSpec(memory_space=pltpu.MemorySpace.VMEM),
    )(x_tb, slab)


def sinrnn_reference(x, w_ih, w_hh, b_ih, b_hh, w_fc, b_fc):
    """Pure-JAX reference of the PyTorch forward pass."""
    B, T, I = x.shape
    H = w_ih.shape[0]
    h = jnp.zeros((B, H), jnp.float32)
    for t in range(T):
        h = jnp.tanh(x[:, t, :] @ w_ih.T + b_ih + h @ w_hh.T + b_hh)
    return h @ w_fc.T + b_fc


if __name__ == "__main__":
    key = jax.random.PRNGKey(0)
    B, T = 2, 8
    H, I, O = HIDDEN_SIZE, INPUT_SIZE, OUTPUT_SIZE

    k_x, k1, k2, k3, k4, k5, k6 = jax.random.split(key, 7)
    # PyTorch-style init: uniform(-1/sqrt(H), 1/sqrt(H)).
    s = 1.0 / jnp.sqrt(H)
    w_ih = jax.random.uniform(k1, (H, I), jnp.float32, -s, s)
    w_hh = jax.random.uniform(k2, (H, H), jnp.float32, -s, s)
    b_ih = jax.random.uniform(k3, (H,), jnp.float32, -s, s)
    b_hh = jax.random.uniform(k4, (H,), jnp.float32, -s, s)
    w_fc = jax.random.uniform(k5, (O, H), jnp.float32, -s, s)
    b_fc = jax.random.uniform(k6, (O,), jnp.float32, -s, s)

    x = jax.random.normal(k_x, (B, T, I), jnp.float32)

    out = sinrnn_forward(x, w_ih, w_hh, b_ih, b_hh, w_fc, b_fc)
    out = jax.block_until_ready(out)

    ref = sinrnn_reference(x, w_ih, w_hh, b_ih, b_hh, w_fc, b_fc)
    assert out.shape == (B, O)
    assert jnp.allclose(out, ref, atol=1e-5, rtol=1e-5)

    print("KERNEL_OK")
</pallas_src>

<mosaic_0001>
module attributes {stable_mosaic.version = 11 : i64} {
  func.func @sinrnn_kernel(%arg0: memref<8x2xf32, #tpu.memory_space<vmem>>, %arg1: memref<40x32xf32, #tpu.memory_space<vmem>>, %arg2: memref<2x1xf32, #tpu.memory_space<vmem>>) attributes {dimension_semantics = [], scalar_prefetch = 0 : i64, scratch_operands = 0 : i64, tpu.core_type = #tpu.core_type<tc>} {
    %c0 = arith.constant 0 : index
    %c0_0 = arith.constant 0 : index
    %0 = vector.load %arg1[%c0, %c0_0] : memref<40x32xf32, #tpu.memory_space<vmem>>, vector<32x32xf32>
    %c32 = arith.constant 32 : index
    %c0_1 = arith.constant 0 : index
    %1 = vector.load %arg1[%c32, %c0_1] : memref<40x32xf32, #tpu.memory_space<vmem>>, vector<1x32xf32>
    %c33 = arith.constant 33 : index
    %c0_2 = arith.constant 0 : index
    %2 = vector.load %arg1[%c33, %c0_2] : memref<40x32xf32, #tpu.memory_space<vmem>>, vector<1x32xf32>
    %c34 = arith.constant 34 : index
    %c0_3 = arith.constant 0 : index
    %3 = vector.load %arg1[%c34, %c0_3] : memref<40x32xf32, #tpu.memory_space<vmem>>, vector<1x32xf32>
    %c35 = arith.constant 35 : index
    %c0_4 = arith.constant 0 : index
    %4 = vector.load %arg1[%c35, %c0_4] : memref<40x32xf32, #tpu.memory_space<vmem>>, vector<1x32xf32>
    %c0_5 = arith.constant 0 : index
    %c0_6 = arith.constant 0 : index
    %5 = vector.load %arg0[%c0_5, %c0_6] : memref<8x2xf32, #tpu.memory_space<vmem>>, vector<8x2xf32>
    %6 = vector.shape_cast %5 : vector<8x2xf32> to vector<8x2x1xf32>
    %7 = vector.shape_cast %1 : vector<1x32xf32> to vector<1x1x32xf32>
    %8 = vector.broadcast %6 : vector<8x2x1xf32> to vector<8x2x32xf32>
    %9 = vector.broadcast %7 : vector<1x1x32xf32> to vector<8x2x32xf32>
    %10 = arith.mulf %8, %9 : vector<8x2x32xf32>
    %11 = vector.shape_cast %2 : vector<1x32xf32> to vector<1x1x32xf32>
    %12 = vector.broadcast %11 : vector<1x1x32xf32> to vector<8x2x32xf32>
    %13 = arith.addf %10, %12 : vector<8x2x32xf32>
    %14 = vector.extract_strided_slice %13 {offsets = [0, 0, 0], sizes = [1, 2, 32], strides = [1, 1, 1]} : vector<8x2x32xf32> to vector<1x2x32xf32>
    %15 = vector.shape_cast %14 : vector<1x2x32xf32> to vector<2x32xf32>
    %16 = math.tanh %15 : vector<2x32xf32>
    %17 = vector.extract_strided_slice %13 {offsets = [1, 0, 0], sizes = [1, 2, 32], strides = [1, 1, 1]} : vector<8x2x32xf32> to vector<1x2x32xf32>
    %18 = vector.shape_cast %17 : vector<1x2x32xf32> to vector<2x32xf32>
    %cst = arith.constant dense<0.000000e+00> : vector<2x32xf32>
    %19 = tpu.matmul %16, %0, %cst {dimension_numbers = #tpu.dot_dimension_numbers<[1], [0], [0], [1], [0, 0, 1, 1], [], []>} : vector<2x32xf32>, vector<32x32xf32>, vector<2x32xf32> -> vector<2x32xf32>
    %20 = arith.addf %18, %19 : vector<2x32xf32>
    %21 = math.tanh %20 : vector<2x32xf32>
    %22 = vector.extract_strided_slice %13 {offsets = [2, 0, 0], sizes = [1, 2, 32], strides = [1, 1, 1]} : vector<8x2x32xf32> to vector<1x2x32xf32>
    %23 = vector.shape_cast %22 : vector<1x2x32xf32> to vector<2x32xf32>
    %cst_7 = arith.constant dense<0.000000e+00> : vector<2x32xf32>
    %24 = tpu.matmul %21, %0, %cst_7 {dimension_numbers = #tpu.dot_dimension_numbers<[1], [0], [0], [1], [0, 0, 1, 1], [], []>} : vector<2x32xf32>, vector<32x32xf32>, vector<2x32xf32> -> vector<2x32xf32>
    %25 = arith.addf %23, %24 : vector<2x32xf32>
    %26 = math.tanh %25 : vector<2x32xf32>
    %27 = vector.extract_strided_slice %13 {offsets = [3, 0, 0], sizes = [1, 2, 32], strides = [1, 1, 1]} : vector<8x2x32xf32> to vector<1x2x32xf32>
    %28 = vector.shape_cast %27 : vector<1x2x32xf32> to vector<2x32xf32>
    %cst_8 = arith.constant dense<0.000000e+00> : vector<2x32xf32>
    %29 = tpu.matmul %26, %0, %cst_8 {dimension_numbers = #tpu.dot_dimension_numbers<[1], [0], [0], [1], [0, 0, 1, 1], [], []>} : vector<2x32xf32>, vector<32x32xf32>, vector<2x32xf32> -> vector<2x32xf32>
    %30 = arith.addf %28, %29 : vector<2x32xf32>
    %31 = math.tanh %30 : vector<2x32xf32>
    %32 = vector.extract_strided_slice %13 {offsets = [4, 0, 0], sizes = [1, 2, 32], strides = [1, 1, 1]} : vector<8x2x32xf32> to vector<1x2x32xf32>
    %33 = vector.shape_cast %32 : vector<1x2x32xf32> to vector<2x32xf32>
    %cst_9 = arith.constant dense<0.000000e+00> : vector<2x32xf32>
    %34 = tpu.matmul %31, %0, %cst_9 {dimension_numbers = #tpu.dot_dimension_numbers<[1], [0], [0], [1], [0, 0, 1, 1], [], []>} : vector<2x32xf32>, vector<32x32xf32>, vector<2x32xf32> -> vector<2x32xf32>
    %35 = arith.addf %33, %34 : vector<2x32xf32>
    %36 = math.tanh %35 : vector<2x32xf32>
    %37 = vector.extract_strided_slice %13 {offsets = [5, 0, 0], sizes = [1, 2, 32], strides = [1, 1, 1]} : vector<8x2x32xf32> to vector<1x2x32xf32>
    %38 = vector.shape_cast %37 : vector<1x2x32xf32> to vector<2x32xf32>
    %cst_10 = arith.constant dense<0.000000e+00> : vector<2x32xf32>
    %39 = tpu.matmul %36, %0, %cst_10 {dimension_numbers = #tpu.dot_dimension_numbers<[1], [0], [0], [1], [0, 0, 1, 1], [], []>} : vector<2x32xf32>, vector<32x32xf32>, vector<2x32xf32> -> vector<2x32xf32>
    %40 = arith.addf %38, %39 : vector<2x32xf32>
    %41 = math.tanh %40 : vector<2x32xf32>
    %42 = vector.extract_strided_slice %13 {offsets = [6, 0, 0], sizes = [1, 2, 32], strides = [1, 1, 1]} : vector<8x2x32xf32> to vector<1x2x32xf32>
    %43 = vector.shape_cast %42 : vector<1x2x32xf32> to vector<2x32xf32>
    %cst_11 = arith.constant dense<0.000000e+00> : vector<2x32xf32>
    %44 = tpu.matmul %41, %0, %cst_11 {dimension_numbers = #tpu.dot_dimension_numbers<[1], [0], [0], [1], [0, 0, 1, 1], [], []>} : vector<2x32xf32>, vector<32x32xf32>, vector<2x32xf32> -> vector<2x32xf32>
    %45 = arith.addf %43, %44 : vector<2x32xf32>
    %46 = math.tanh %45 : vector<2x32xf32>
    %47 = vector.extract_strided_slice %13 {offsets = [7, 0, 0], sizes = [1, 2, 32], strides = [1, 1, 1]} : vector<8x2x32xf32> to vector<1x2x32xf32>
    %48 = vector.shape_cast %47 : vector<1x2x32xf32> to vector<2x32xf32>
    %cst_12 = arith.constant dense<0.000000e+00> : vector<2x32xf32>
    %49 = tpu.matmul %46, %0, %cst_12 {dimension_numbers = #tpu.dot_dimension_numbers<[1], [0], [0], [1], [0, 0, 1, 1], [], []>} : vector<2x32xf32>, vector<32x32xf32>, vector<2x32xf32> -> vector<2x32xf32>
    %50 = arith.addf %48, %49 : vector<2x32xf32>
    %51 = math.tanh %50 : vector<2x32xf32>
    %52 = vector.broadcast %3 : vector<1x32xf32> to vector<2x32xf32>
    %53 = arith.mulf %51, %52 : vector<2x32xf32>
    %cst_13 = arith.constant dense<0.000000e+00> : vector<2xf32>
    %54 = vector.multi_reduction <add>, %53, %cst_13 [1] : vector<2x32xf32> to vector<2xf32>
    %55 = vector.shape_cast %54 : vector<2xf32> to vector<2x1xf32>
    %56 = vector.extract_strided_slice %4 {offsets = [0, 0], sizes = [1, 1], strides = [1, 1]} : vector<1x32xf32> to vector<1x1xf32>
    %57 = vector.broadcast %56 : vector<1x1xf32> to vector<2x1xf32>
    %58 = arith.addf %55, %57 : vector<2x1xf32>
    %c0_14 = arith.constant 0 : index
    %c0_15 = arith.constant 0 : index
    %59 = vector.load %arg2[%c0_14, %c0_15] : memref<2x1xf32, #tpu.memory_space<vmem>>, vector<2x1xf32>
    tpu.vector_store %arg2[%c0_14, %c0_15], %58 {strides = array<i32>} : memref<2x1xf32, #tpu.memory_space<vmem>>, vector<2x1xf32>,
    return
  }
}

</mosaic_0001>

<llo_original>
// kernel: tpu_custom_call.1
$region0: #{tpu_custom_call.1}
  #allocation0 [shape = 'u32[]', space=smem, size = 0x4, offset = 0x4, fixed_abs, tag = 'smem constant byte address 0x4 - core index']
  #allocation1 [shape = 'u32[72,128]{1,0:T(1,128)}', space=vmem, size = 0x9000, scoped, tag = 'internal scratch']
  %s0 = inlined_call_operand.vmem [shape: f32[8,2], index: 0, kind: input, shape index: {}]
  %s1 = inlined_call_operand.vmem [shape: f32[40,32], index: 1, kind: input, shape index: {}]
  %s2 = inlined_call_operand.vmem [shape: f32[2,1], index: 2, kind: output, shape index: {}]
  %s3 = sld [smem:[#allocation0]]
  $region18: #{tpu_custom_call.1} parent=0
    _
  %s5 = ssub.s32 1, %s3
  %s6 = scalar_select 0, %s5, %s3
  // Predicated region
  $region2: #{tpu_custom_call.1} parent=0 // pred_check
    _
  $region3: #{tpu_custom_call.1} parent=0 // pred_check_branch
    %8 = sbr.rel (0) target = $region5
  $region4: #{tpu_custom_call.1} parent=0 // pred_region
    _
  $region5: #{tpu_custom_call.1} parent=0 // pred_fallthru
    _
  // Predicated region
  $region6: #{tpu_custom_call.1} parent=0 // pred_check
    _
  $region7: #{tpu_custom_call.1} parent=0 // pred_check_branch
    %10 = sbr.rel (0) target = $region9
  $region8: #{tpu_custom_call.1} parent=0 // pred_region
    _
  $region9: #{tpu_custom_call.1} parent=0 // pred_fallthru
    _
  %v11 = vld [vmem:[%s1] sm:$0xff]
  %v12 = vld [vmem:[%s1 + $0x8] sm:$0xff]
  %v13 = vld [vmem:[%s1 + $0x10] sm:$0xff]
  %v14 = vld [vmem:[%s1 + $0x18] sm:$0xff]
  %v15 = vld [vmem:[%s1 + $0x20] sm:$0x1]
  %v16 = vld [vmem:[%s1 + $0x21] sm:$0x1]
  %v17 = vld [vmem:[%s1 + $0x22] sm:$0x1]
  %v18 = vld [vmem:[%s1 + $0x23] sm:$0x1]
  %v19 = vld [vmem:[%s0] sm:$0xff]
  %v20 = vperm.slane %v19, 0
  %v21 = vlaneseq
  %v22 = vshrl.u32 %v21, 7
  %24 = vset.pattern.permute.xlu0 %v22
  %25 = vperm.xlu0 %24, %v20
  %v26 = vpop.permute.xlu0 %25
  %v27 = vperm.slane %v19, 1
  %v28 = vlaneseq
  %v29 = vshrl.u32 %v28, 7
  %31 = vset.pattern.permute.xlu0 %v29
  %32 = vperm.xlu0 %31, %v27
  %v33 = vpop.permute.xlu0 %32
  %v34 = vperm.slane %v19, 2
  %v35 = vlaneseq
  %v36 = vshrl.u32 %v35, 7
  %38 = vset.pattern.permute.xlu0 %v36
  %39 = vperm.xlu0 %38, %v34
  %v40 = vpop.permute.xlu0 %39
  %v41 = vperm.slane %v19, 3
  %v42 = vlaneseq
  %v43 = vshrl.u32 %v42, 7
  %45 = vset.pattern.permute.xlu0 %v43
  %46 = vperm.xlu0 %45, %v41
  %v47 = vpop.permute.xlu0 %46
  %v48 = vperm.slane %v19, 4
  %v49 = vlaneseq
  %v50 = vshrl.u32 %v49, 7
  %52 = vset.pattern.permute.xlu0 %v50
  %53 = vperm.xlu0 %52, %v48
  %v54 = vpop.permute.xlu0 %53
  %v55 = vperm.slane %v19, 5
  %v56 = vlaneseq
  %v57 = vshrl.u32 %v56, 7
  %59 = vset.pattern.permute.xlu0 %v57
  %60 = vperm.xlu0 %59, %v55
  %v61 = vpop.permute.xlu0 %60
  %v62 = vperm.slane %v19, 6
  %v63 = vlaneseq
  %v64 = vshrl.u32 %v63, 7
  %66 = vset.pattern.permute.xlu0 %v64
  %67 = vperm.xlu0 %66, %v62
  %v68 = vpop.permute.xlu0 %67
  %v69 = vperm.slane %v19, 7
  %v70 = vlaneseq
  %v71 = vshrl.u32 %v70, 7
  %73 = vset.pattern.permute.xlu0 %v71
  %74 = vperm.xlu0 %73, %v69
  %v75 = vpop.permute.xlu0 %74
  %v76 = vperm.slane %v15, 0
  %v77 = vmul.f32 %v26, %v76
  %v78 = vmul.f32 %v33, %v76
  %v79 = vmul.f32 %v40, %v76
  %v80 = vmul.f32 %v47, %v76
  %v81 = vmul.f32 %v54, %v76
  %v82 = vmul.f32 %v61, %v76
  %v83 = vmul.f32 %v68, %v76
  %v84 = vmul.f32 %v75, %v76
  %v85 = vperm.slane %v16, 0
  %v86 = vadd.f32 %v77, %v85
  %v87 = vadd.f32 %v78, %v85
  %v88 = vadd.f32 %v79, %v85
  %v89 = vadd.f32 %v80, %v85
  %v90 = vadd.f32 %v81, %v85
  %v91 = vadd.f32 %v82, %v85
  %v92 = vadd.f32 %v83, %v85
  %v93 = vadd.f32 %v84, %v85
  %v94 = vtanh.pop %v86
  %vm95 = vcmask 261120
  %v97 = vsel %vm95, %v94, 0
  %99 = vmatpush.msra.mxu0 0.0
  %100 = vmatpush.msra.mxu0 0.0
  %101 = vmatpush.msra.mxu0 0.0
  %102 = vmatpush.msra.mxu0 0.0
  %103 = vmatpush.msra.mxu0 0.0
  %104 = vmatpush.msra.mxu0 0.0
  %105 = vmatpush.msra.mxu0 0.0
  %106 = vmatpush.msra.mxu0 0.0
  %107 = vmatpush.msra.mxu0 0.0
  %108 = vmatpush.msra.mxu0 0.0
  %109 = vmatpush.msra.mxu0 0.0
  %110 = vmatpush.msra.mxu0 0.0
  %111 = vmatpush.msra.mxu0 %v14
  %112 = vmatpush.msra.mxu0 %v13
  %113 = vmatpush.msra.mxu0 %v12
  %114 = vmatpush.msra.mxu0 %v11
  %115 = vmatmul.f32.gmra.mxu0 %v97
  %v116 = vpop.f32.mrf.mxu0
  %v117 = vadd.f32 0.0, %v116
  %118 = vdwg.mxu0
  %v119 = vadd.f32 %v87, %v117
  %v120 = vtanh.pop %v119
  %v122 = vsel %vm95, %v120, 0
  %124 = vmatpush.msra.mxu0 0.0
  %125 = vmatpush.msra.mxu0 0.0
  %126 = vmatpush.msra.mxu0 0.0
  %127 = vmatpush.msra.mxu0 0.0
  %128 = vmatpush.msra.mxu0 0.0
  %129 = vmatpush.msra.mxu0 0.0
  %130 = vmatpush.msra.mxu0 0.0
  %131 = vmatpush.msra.mxu0 0.0
  %132 = vmatpush.msra.mxu0 0.0
  %133 = vmatpush.msra.mxu0 0.0
  %134 = vmatpush.msra.mxu0 0.0
  %135 = vmatpush.msra.mxu0 0.0
  %136 = vmatpush.msra.mxu0 %v14
  %137 = vmatpush.msra.mxu0 %v13
  %138 = vmatpush.msra.mxu0 %v12
  %139 = vmatpush.msra.mxu0 %v11
  %140 = vmatmul.f32.gmra.mxu0 %v122
  %v141 = vpop.f32.mrf.mxu0
  %v142 = vadd.f32 0.0, %v141
  %143 = vdwg.mxu0
  %v144 = vadd.f32 %v88, %v142
  %v145 = vtanh.pop %v144
  %v147 = vsel %vm95, %v145, 0
  %149 = vmatpush.msra.mxu0 0.0
  %150 = vmatpush.msra.mxu0 0.0
  %151 = vmatpush.msra.mxu0 0.0
  %152 = vmatpush.msra.mxu0 0.0
  %153 = vmatpush.msra.mxu0 0.0
  %154 = vmatpush.msra.mxu0 0.0
  %155 = vmatpush.msra.mxu0 0.0
  %156 = vmatpush.msra.mxu0 0.0
  %157 = vmatpush.msra.mxu0 0.0
  %158 = vmatpush.msra.mxu0 0.0
  %159 = vmatpush.msra.mxu0 0.0
  %160 = vmatpush.msra.mxu0 0.0
  %161 = vmatpush.msra.mxu0 %v14
  %162 = vmatpush.msra.mxu0 %v13
  %163 = vmatpush.msra.mxu0 %v12
  %164 = vmatpush.msra.mxu0 %v11
  %165 = vmatmul.f32.gmra.mxu0 %v147
  %v166 = vpop.f32.mrf.mxu0
  %v167 = vadd.f32 0.0, %v166
  %168 = vdwg.mxu0
  %v169 = vadd.f32 %v89, %v167
  %v170 = vtanh.pop %v169
  %v172 = vsel %vm95, %v170, 0
  %174 = vmatpush.msra.mxu0 0.0
  %175 = vmatpush.msra.mxu0 0.0
  %176 = vmatpush.msra.mxu0 0.0
  %177 = vmatpush.msra.mxu0 0.0
  %178 = vmatpush.msra.mxu0 0.0
  %179 = vmatpush.msra.mxu0 0.0
  %180 = vmatpush.msra.mxu0 0.0
  %181 = vmatpush.msra.mxu0 0.0
  %182 = vmatpush.msra.mxu0 0.0
  %183 = vmatpush.msra.mxu0 0.0
  %184 = vmatpush.msra.mxu0 0.0
  %185 = vmatpush.msra.mxu0 0.0
  %186 = vmatpush.msra.mxu0 %v14
  %187 = vmatpush.msra.mxu0 %v13
  %188 = vmatpush.msra.mxu0 %v12
  %189 = vmatpush.msra.mxu0 %v11
  %190 = vmatmul.f32.gmra.mxu0 %v172
  %v191 = vpop.f32.mrf.mxu0
  %v192 = vadd.f32 0.0, %v191
  %193 = vdwg.mxu0
  %v194 = vadd.f32 %v90, %v192
  %v195 = vtanh.pop %v194
  %v197 = vsel %vm95, %v195, 0
  %199 = vmatpush.msra.mxu0 0.0
  %200 = vmatpush.msra.mxu0 0.0
  %201 = vmatpush.msra.mxu0 0.0
  %202 = vmatpush.msra.mxu0 0.0
  %203 = vmatpush.msra.mxu0 0.0
  %204 = vmatpush.msra.mxu0 0.0
  %205 = vmatpush.msra.mxu0 0.0
  %206 = vmatpush.msra.mxu0 0.0
  %207 = vmatpush.msra.mxu0 0.0
  %208 = vmatpush.msra.mxu0 0.0
  %209 = vmatpush.msra.mxu0 0.0
  %210 = vmatpush.msra.mxu0 0.0
  %211 = vmatpush.msra.mxu0 %v14
  %212 = vmatpush.msra.mxu0 %v13
  %213 = vmatpush.msra.mxu0 %v12
  %214 = vmatpush.msra.mxu0 %v11
  %215 = vmatmul.f32.gmra.mxu0 %v197
  %v216 = vpop.f32.mrf.mxu0
  %v217 = vadd.f32 0.0, %v216
  %218 = vdwg.mxu0
  %v219 = vadd.f32 %v91, %v217
  %v220 = vtanh.pop %v219
  %v222 = vsel %vm95, %v220, 0
  %224 = vmatpush.msra.mxu0 0.0
  %225 = vmatpush.msra.mxu0 0.0
  %226 = vmatpush.msra.mxu0 0.0
  %227 = vmatpush.msra.mxu0 0.0
  %228 = vmatpush.msra.mxu0 0.0
  %229 = vmatpush.msra.mxu0 0.0
  %230 = vmatpush.msra.mxu0 0.0
  %231 = vmatpush.msra.mxu0 0.0
  %232 = vmatpush.msra.mxu0 0.0
  %233 = vmatpush.msra.mxu0 0.0
  %234 = vmatpush.msra.mxu0 0.0
  %235 = vmatpush.msra.mxu0 0.0
  %236 = vmatpush.msra.mxu0 %v14
  %237 = vmatpush.msra.mxu0 %v13
  %238 = vmatpush.msra.mxu0 %v12
  %239 = vmatpush.msra.mxu0 %v11
  %240 = vmatmul.f32.gmra.mxu0 %v222
  %v241 = vpop.f32.mrf.mxu0
  %v242 = vadd.f32 0.0, %v241
  %243 = vdwg.mxu0
  %v244 = vadd.f32 %v92, %v242
  %v245 = vtanh.pop %v244
  %v247 = vsel %vm95, %v245, 0
  %249 = vmatpush.msra.mxu0 0.0
  %250 = vmatpush.msra.mxu0 0.0
  %251 = vmatpush.msra.mxu0 0.0
  %252 = vmatpush.msra.mxu0 0.0
  %253 = vmatpush.msra.mxu0 0.0
  %254 = vmatpush.msra.mxu0 0.0
  %255 = vmatpush.msra.mxu0 0.0
  %256 = vmatpush.msra.mxu0 0.0
  %257 = vmatpush.msra.mxu0 0.0
  %258 = vmatpush.msra.mxu0 0.0
  %259 = vmatpush.msra.mxu0 0.0
  %260 = vmatpush.msra.mxu0 0.0
  %261 = vmatpush.msra.mxu0 %v14
  %262 = vmatpush.msra.mxu0 %v13
  %263 = vmatpush.msra.mxu0 %v12
  %264 = vmatpush.msra.mxu0 %v11
  %265 = vmatmul.f32.gmra.mxu0 %v247
  %v266 = vpop.f32.mrf.mxu0
  %v267 = vadd.f32 0.0, %v266
  %268 = vdwg.mxu0
  %v269 = vadd.f32 %v93, %v267
  %v270 = vtanh.pop %v269
  %v271 = vperm.slane %v17, 0
  %v272 = vmul.f32 %v270, %v271
  %vm273 = vcmask 254976
  %v274 = vsel %vm273, %v272, 0.0
  %275 = vadd.xlane.f32.xlu0 %v274
  %v276 = vpop.xlane.xlu0 %275
  %v277 = vperm.slane %v18, 0
  %v278 = vadd.f32 %v276, %v277
  %vm279 = vcmask 1024
  %280 = vst.msk [vmem:[%s2] sm:$0x3] %vm279, %v278
  // Predicated region
  $region10: #{tpu_custom_call.1} parent=0 // pred_check
    _
  $region11: #{tpu_custom_call.1} parent=0 // pred_check_branch
    %282 = sbr.rel (0) target = $region13
  $region12: #{tpu_custom_call.1} parent=0 // pred_region
    _
  $region13: #{tpu_custom_call.1} parent=0 // pred_fallthru
    _
  // Predicated region
  $region14: #{tpu_custom_call.1} parent=0 // pred_check
    _
  $region15: #{tpu_custom_call.1} parent=0 // pred_check_branch
    %284 = sbr.rel (0) target = $region17
  $region16: #{tpu_custom_call.1} parent=0 // pred_region
    _
  $region17: #{tpu_custom_call.1} parent=0 // pred_fallthru
    _

</llo_original>
